<compile_context>
chip_gen: v5e
topology: v5e:2x2
jax: 0.10.0
libtpu: 0.0.40
codegen_flags: <defaults>
</compile_context>

<pallas_src>
import jax
import jax.numpy as jnp
from jax import lax
from jax.experimental import pallas as pl
from jax.experimental.pallas import tpu as pltpu


# --------------------------------------------------------------------------
# Kernel
# --------------------------------------------------------------------------
def _simmin_kernel(fg_ref, bg_ref, out_ref):
    # fg_ref: (rows, cb, D) block of fg rows for this step's class block
    # bg_ref: (N,    cb, D) all bg rows for this step's class block
    cb = fg_ref.shape[1]
    eps2 = 1e-24  # (F.normalize eps=1e-12)**2

    total = jnp.float32(0.0)
    for c in range(cb):  # static unroll over the class block
        a = fg_ref[:, c, :].astype(jnp.float32)          # (rows, D)
        b = bg_ref[:, c, :].astype(jnp.float32)          # (N, D)
        # x / max(||x||, eps)  ==  x * rsqrt(max(||x||^2, eps^2))  (EUP rsqrt)
        a = a * lax.rsqrt(
            jnp.maximum(jnp.sum(a * a, axis=-1, keepdims=True), eps2))
        b = b * lax.rsqrt(
            jnp.maximum(jnp.sum(b * b, axis=-1, keepdims=True), eps2))
        # Cosine-similarity block a @ b.T: contract the last dims of both
        # operands -> no in-kernel transpose, f32 accumulation on the MXU.
        sim = lax.dot_general(a, b, (((1,), (1,)), ((), ())),
                              preferred_element_type=jnp.float32)
        sim = jnp.clip(sim, 0.0005, 0.9995)
        total = total + jnp.sum(-jnp.log(1.0 - sim))

    # One partial sum per grid step, written as a full lane-dense (8,128)
    # tile (unmasked store); both grid axes therefore stay 'parallel'.
    out_ref[...] = jnp.full(out_ref.shape, total, dtype=jnp.float32)


# --------------------------------------------------------------------------
# Tiling / VMEM heuristics
# --------------------------------------------------------------------------
def _round_up(x, m):
    return ((x + m - 1) // m) * m


def _sublane_multiple(itemsize):
    return {4: 8, 2: 16, 1: 32}.get(itemsize, 8)


def _vmem_budget_and_limit():
    """Generation-aware working-set budget and scoped-VMEM limit (bytes)."""
    try:
        phys = int(pltpu.get_tpu_info().vmem_capacity_bytes)
    except Exception:
        phys = 0
    if phys <= 0:
        phys = 64 * 1024 * 1024            # conservative: v7x has 64 MiB/core
    budget = min(28 * 1024 * 1024, phys // 3)   # v5e/v6e ~28 MiB, v7x ~21 MiB
    limit = min(phys * 3 // 4, 96 * 1024 * 1024)
    limit = max(limit, budget + 8 * 1024 * 1024)
    return budget, limit


def _choose_tiling(N, C, D, itemsize, budget_bytes):
    """Pick (rows_per_block, classes_per_block) with padded VMEM accounting."""
    sub_in = _sublane_multiple(itemsize)
    d_pad = _round_up(D, 128)

    def footprint(rn, cb):
        cb_pad = _round_up(cb, sub_in)
        # double-buffered DMA'd input tiles (incoming dtype)
        dma = 2 * (rn + N) * cb_pad * d_pad * itemsize
        # per-class f32 working set (normalized slices + sim/loss tile);
        # 3x slack for compiler temporaries across the unrolled class loop
        work = 3 * ((_round_up(rn, 8) + _round_up(N, 8)) * d_pad
                    + _round_up(rn, 8) * _round_up(N, 128)) * 4
        out = 2 * 8 * 128 * 4
        return dma + work + out

    # Class blocks must satisfy the (sublane, lane) block constraint: the
    # second-to-last block dim is a multiple of the sublane count or == C.
    cbs = [c for c in range(1, C + 1)
           if C % c == 0 and (c == C or c % sub_in == 0)]
    # Row blocks are a leading block dim (no layout constraint); keep them
    # sublane-sized or full so the per-class matmul M dim is never tiny.
    rns = [r for r in range(1, N + 1) if N % r == 0 and (r == N or r % 8 == 0)]

    cands = [(footprint(r, c), (C // c) * (N // r), r, c)
             for c in cbs for r in rns]
    fitting = [x for x in cands if x[0] <= budget_bytes]
    if fitting:
        # Prefer >=2 grid steps (keeps both v7x TensorCores busy), then the
        # fewest steps (amortize ~0.35us/step), then larger class blocks
        # (bigger contiguous DMAs), then larger row blocks.
        multi = [x for x in fitting if x[1] >= 2]
        pool = multi if multi else fitting
        pool.sort(key=lambda x: (x[1], -x[3], -x[2]))
        _, _, rn, cb = pool[0]
    else:
        # Nothing fits the budget: smallest footprint, rely on the explicit
        # vmem_limit_bytes headroom.
        cands.sort(key=lambda x: x[0])
        _, _, rn, cb = cands[0]
    return rn, cb


# --------------------------------------------------------------------------
# Wrapper
# --------------------------------------------------------------------------
def sim_min_loss(embedded_fg, embedded_bg, reduction="mean", dma_dtype=None,
                 vmem_budget_bytes=None):
    """Pallas implementation of SimMinLoss(metric='cos', intra=True).

    dma_dtype: optionally jnp.bfloat16 to halve HBM traffic for this
      mem-bound kernel (normalization / accumulation stay f32).  Note that
      d(-log(1-s))/ds is up to 2000 near the 0.9995 clamp, so validate the
      bf16 path against f32 on real data before enabling it by default.
    """
    # TODO(synk): only the intra=True branch of cos_simi (the module default)
    # is implemented; the inter-class itertools.combinations branch is not.
    N, C, D = embedded_fg.shape
    assert embedded_bg.shape == (N, C, D)
    if reduction not in ("mean", "sum"):
        raise ValueError("Reduction must be 'mean' or 'sum'.")

    if dma_dtype is not None:
        embedded_fg = embedded_fg.astype(dma_dtype)
        embedded_bg = embedded_bg.astype(dma_dtype)
    itemsize = jnp.dtype(embedded_fg.dtype).itemsize

    budget, vmem_limit = _vmem_budget_and_limit()
    if vmem_budget_bytes is not None:
        budget = vmem_budget_bytes
    rn, cb = _choose_tiling(N, C, D, itemsize, budget)
    r_blocks = N // rn
    g_blocks = C // cb

    partials = pl.pallas_call(
        _simmin_kernel,
        out_shape=jax.ShapeDtypeStruct((g_blocks, r_blocks, 8, 128),
                                       jnp.float32),
        grid_spec=pltpu.PrefetchScalarGridSpec(
            num_scalar_prefetch=0,
            # Row axis innermost: the bg block index is constant while rows
            # sweep, so bg (like fg) is DMA'd from HBM exactly once.
            grid=(g_blocks, r_blocks),
            in_specs=[
                pl.BlockSpec((rn, cb, D), lambda g, r: (r, g, 0)),
                pl.BlockSpec((N, cb, D), lambda g, r: (0, g, 0)),
            ],
            out_specs=pl.BlockSpec((1, 1, 8, 128), lambda g, r: (g, r, 0, 0)),
        ),
        compiler_params=pltpu.CompilerParams(
            dimension_semantics=("parallel", "parallel"),
            vmem_limit_bytes=int(vmem_limit)),
        cost_estimate=pl.CostEstimate(
            flops=2 * C * N * N * D + 6 * N * C * D,
            transcendentals=C * N * N + 2 * N * C,
            bytes_accessed=2 * N * C * D * itemsize
            + g_blocks * r_blocks * 8 * 128 * 4),
    )(embedded_fg, embedded_bg)

    total = jnp.sum(partials[:, :, 0, 0])
    if reduction == "mean":
        return total / (N * C * N)
    return total


# --------------------------------------------------------------------------
# Pure-JAX reference mirroring the PyTorch code (metric='cos', intra=True)
# --------------------------------------------------------------------------
def _reference(embedded_fg, embedded_bg):
    def norm(x):
        n = jnp.sqrt(jnp.sum(x * x, axis=2, keepdims=True))
        return x / jnp.maximum(n, 1e-12)

    fg_n = norm(embedded_fg)
    bg_n = norm(embedded_bg)
    sim = jnp.einsum("ncd,mcd->ncm", fg_n, bg_n)    # [N, C, N]
    sim = jnp.clip(sim, 0.0005, 0.9995)
    return jnp.mean(-jnp.log(1.0 - sim))


if __name__ == "__main__":
    key = jax.random.PRNGKey(0)

    # [batch, num_classes, feature_dim]; the second case exercises the
    # multi-step (row-blocked) grid and the constant-bg revisit path.
    for (N, C, D) in [(2, 4, 32), (16, 8, 128)]:
        key, k_fg, k_bg = jax.random.split(key, 3)
        embedded_fg = jax.random.normal(k_fg, (N, C, D), dtype=jnp.float32)
        embedded_bg = jax.random.normal(k_bg, (N, C, D), dtype=jnp.float32)

        out = jax.block_until_ready(
            sim_min_loss(embedded_fg, embedded_bg, reduction="mean"))
        ref = jax.block_until_ready(_reference(embedded_fg, embedded_bg))
        assert jnp.allclose(out, ref, rtol=1e-4, atol=1e-5), (N, C, D, out, ref)

    print("KERNEL_OK")
</pallas_src>

<mosaic_0001>
module attributes {stable_mosaic.version = 11 : i64} {
  func.func @_simmin_kernel(%arg0: i32, %arg1: i32, %arg2: memref<2x4x32xf32, #tpu.memory_space<vmem>>, %arg3: memref<2x4x32xf32, #tpu.memory_space<vmem>>, %arg4: memref<1x1x8x128xf32, #tpu.memory_space<vmem>>) attributes {dimension_semantics = [#tpu.dimension_semantics<parallel>, #tpu.dimension_semantics<parallel>], iteration_bounds = array<i64: 1, 1>, scalar_prefetch = 0 : i64, scratch_operands = 0 : i64, tpu.core_type = #tpu.core_type<tc>, window_params = [{transform_indices = @transform_0, window_bounds = array<i64: 2, 4, 32>}, {transform_indices = @transform_1, window_bounds = array<i64: 2, 4, 32>}, {transform_indices = @transform_2, window_bounds = array<i64: 1, 1, 8, 128>}]} {
    %c0 = arith.constant 0 : index
    %c0_0 = arith.constant 0 : index
    %c0_1 = arith.constant 0 : index
    %0 = vector.load %arg2[%c0, %c0_0, %c0_1] : memref<2x4x32xf32, #tpu.memory_space<vmem>>, vector<2x1x32xf32>
    %1 = vector.shape_cast %0 : vector<2x1x32xf32> to vector<2x32xf32>
    %c0_2 = arith.constant 0 : index
    %c0_3 = arith.constant 0 : index
    %c0_4 = arith.constant 0 : index
    %2 = vector.load %arg3[%c0_2, %c0_3, %c0_4] : memref<2x4x32xf32, #tpu.memory_space<vmem>>, vector<2x1x32xf32>
    %3 = vector.shape_cast %2 : vector<2x1x32xf32> to vector<2x32xf32>
    %4 = arith.mulf %1, %1 : vector<2x32xf32>
    %cst = arith.constant dense<0.000000e+00> : vector<2xf32>
    %5 = vector.multi_reduction <add>, %4, %cst [1] : vector<2x32xf32> to vector<2xf32>
    %6 = vector.shape_cast %5 : vector<2xf32> to vector<2x1xf32>
    %cst_5 = arith.constant 1.000000e-24 : f32
    %7 = vector.broadcast %cst_5 : f32 to vector<2x1xf32>
    %8 = arith.maximumf %6, %7 : vector<2x1xf32>
    %9 = math.rsqrt %8 : vector<2x1xf32>
    %10 = vector.broadcast %9 : vector<2x1xf32> to vector<2x32xf32>
    %11 = arith.mulf %1, %10 : vector<2x32xf32>
    %12 = arith.mulf %3, %3 : vector<2x32xf32>
    %cst_6 = arith.constant dense<0.000000e+00> : vector<2xf32>
    %13 = vector.multi_reduction <add>, %12, %cst_6 [1] : vector<2x32xf32> to vector<2xf32>
    %14 = vector.shape_cast %13 : vector<2xf32> to vector<2x1xf32>
    %cst_7 = arith.constant 1.000000e-24 : f32
    %15 = vector.broadcast %cst_7 : f32 to vector<2x1xf32>
    %16 = arith.maximumf %14, %15 : vector<2x1xf32>
    %17 = math.rsqrt %16 : vector<2x1xf32>
    %18 = vector.broadcast %17 : vector<2x1xf32> to vector<2x32xf32>
    %19 = arith.mulf %3, %18 : vector<2x32xf32>
    %cst_8 = arith.constant dense<0.000000e+00> : vector<2x2xf32>
    %20 = tpu.matmul %11, %19, %cst_8 {dimension_numbers = #tpu.dot_dimension_numbers<[1], [1], [0], [0], [0, 0, 1, 0], [], []>} : vector<2x32xf32>, vector<2x32xf32>, vector<2x2xf32> -> vector<2x2xf32>
    %cst_9 = arith.constant 5.000000e-04 : f32
    %cst_10 = arith.constant 0.999499976 : f32
    %21 = vector.broadcast %cst_9 : f32 to vector<2x2xf32>
    %22 = arith.maximumf %21, %20 : vector<2x2xf32>
    %23 = vector.broadcast %cst_10 : f32 to vector<2x2xf32>
    %24 = arith.minimumf %23, %22 : vector<2x2xf32>
    %cst_11 = arith.constant 1.000000e+00 : f32
    %25 = vector.broadcast %cst_11 : f32 to vector<2x2xf32>
    %26 = arith.subf %25, %24 : vector<2x2xf32>
    %27 = math.log %26 : vector<2x2xf32>
    %cst_12 = arith.constant 0.000000e+00 : f32
    %28 = vector.broadcast %cst_12 : f32 to vector<2x2xf32>
    %29 = arith.subf %28, %27 : vector<2x2xf32>
    %30 = vector.shape_cast %29 : vector<2x2xf32> to vector<1x2x2xf32>
    %cst_13 = arith.constant dense<0.000000e+00> : vector<1xf32>
    %31 = vector.multi_reduction <add>, %30, %cst_13 [1, 2] : vector<1x2x2xf32> to vector<1xf32>
    %32 = vector.shape_cast %31 : vector<1xf32> to vector<1x1x1xf32>
    %33 = vector.extract %32[0, 0, 0] : f32 from vector<1x1x1xf32>
    %cst_14 = arith.constant 0.000000e+00 : f32
    %34 = arith.addf %cst_14, %33 : f32
    %c0_15 = arith.constant 0 : index
    %c1 = arith.constant 1 : index
    %c0_16 = arith.constant 0 : index
    %35 = vector.load %arg2[%c0_15, %c1, %c0_16] : memref<2x4x32xf32, #tpu.memory_space<vmem>>, vector<2x1x32xf32>
    %36 = vector.shape_cast %35 : vector<2x1x32xf32> to vector<2x32xf32>
    %c0_17 = arith.constant 0 : index
    %c1_18 = arith.constant 1 : index
    %c0_19 = arith.constant 0 : index
    %37 = vector.load %arg3[%c0_17, %c1_18, %c0_19] : memref<2x4x32xf32, #tpu.memory_space<vmem>>, vector<2x1x32xf32>
    %38 = vector.shape_cast %37 : vector<2x1x32xf32> to vector<2x32xf32>
    %39 = arith.mulf %36, %36 : vector<2x32xf32>
    %cst_20 = arith.constant dense<0.000000e+00> : vector<2xf32>
    %40 = vector.multi_reduction <add>, %39, %cst_20 [1] : vector<2x32xf32> to vector<2xf32>
    %41 = vector.shape_cast %40 : vector<2xf32> to vector<2x1xf32>
    %cst_21 = arith.constant 1.000000e-24 : f32
    %42 = vector.broadcast %cst_21 : f32 to vector<2x1xf32>
    %43 = arith.maximumf %41, %42 : vector<2x1xf32>
    %44 = math.rsqrt %43 : vector<2x1xf32>
    %45 = vector.broadcast %44 : vector<2x1xf32> to vector<2x32xf32>
    %46 = arith.mulf %36, %45 : vector<2x32xf32>
    %47 = arith.mulf %38, %38 : vector<2x32xf32>
    %cst_22 = arith.constant dense<0.000000e+00> : vector<2xf32>
    %48 = vector.multi_reduction <add>, %47, %cst_22 [1] : vector<2x32xf32> to vector<2xf32>
    %49 = vector.shape_cast %48 : vector<2xf32> to vector<2x1xf32>
    %cst_23 = arith.constant 1.000000e-24 : f32
    %50 = vector.broadcast %cst_23 : f32 to vector<2x1xf32>
    %51 = arith.maximumf %49, %50 : vector<2x1xf32>
    %52 = math.rsqrt %51 : vector<2x1xf32>
    %53 = vector.broadcast %52 : vector<2x1xf32> to vector<2x32xf32>
    %54 = arith.mulf %38, %53 : vector<2x32xf32>
    %cst_24 = arith.constant dense<0.000000e+00> : vector<2x2xf32>
    %55 = tpu.matmul %46, %54, %cst_24 {dimension_numbers = #tpu.dot_dimension_numbers<[1], [1], [0], [0], [0, 0, 1, 0], [], []>} : vector<2x32xf32>, vector<2x32xf32>, vector<2x2xf32> -> vector<2x2xf32>
    %cst_25 = arith.constant 5.000000e-04 : f32
    %cst_26 = arith.constant 0.999499976 : f32
    %56 = vector.broadcast %cst_25 : f32 to vector<2x2xf32>
    %57 = arith.maximumf %56, %55 : vector<2x2xf32>
    %58 = vector.broadcast %cst_26 : f32 to vector<2x2xf32>
    %59 = arith.minimumf %58, %57 : vector<2x2xf32>
    %cst_27 = arith.constant 1.000000e+00 : f32
    %60 = vector.broadcast %cst_27 : f32 to vector<2x2xf32>
    %61 = arith.subf %60, %59 : vector<2x2xf32>
    %62 = math.log %61 : vector<2x2xf32>
    %cst_28 = arith.constant 0.000000e+00 : f32
    %63 = vector.broadcast %cst_28 : f32 to vector<2x2xf32>
    %64 = arith.subf %63, %62 : vector<2x2xf32>
    %65 = vector.shape_cast %64 : vector<2x2xf32> to vector<1x2x2xf32>
    %cst_29 = arith.constant dense<0.000000e+00> : vector<1xf32>
    %66 = vector.multi_reduction <add>, %65, %cst_29 [1, 2] : vector<1x2x2xf32> to vector<1xf32>
    %67 = vector.shape_cast %66 : vector<1xf32> to vector<1x1x1xf32>
    %68 = vector.extract %67[0, 0, 0] : f32 from vector<1x1x1xf32>
    %69 = arith.addf %34, %68 : f32
    %c0_30 = arith.constant 0 : index
    %c2 = arith.constant 2 : index
    %c0_31 = arith.constant 0 : index
    %70 = vector.load %arg2[%c0_30, %c2, %c0_31] : memref<2x4x32xf32, #tpu.memory_space<vmem>>, vector<2x1x32xf32>
    %71 = vector.shape_cast %70 : vector<2x1x32xf32> to vector<2x32xf32>
    %c0_32 = arith.constant 0 : index
    %c2_33 = arith.constant 2 : index
    %c0_34 = arith.constant 0 : index
    %72 = vector.load %arg3[%c0_32, %c2_33, %c0_34] : memref<2x4x32xf32, #tpu.memory_space<vmem>>, vector<2x1x32xf32>
    %73 = vector.shape_cast %72 : vector<2x1x32xf32> to vector<2x32xf32>
    %74 = arith.mulf %71, %71 : vector<2x32xf32>
    %cst_35 = arith.constant dense<0.000000e+00> : vector<2xf32>
    %75 = vector.multi_reduction <add>, %74, %cst_35 [1] : vector<2x32xf32> to vector<2xf32>
    %76 = vector.shape_cast %75 : vector<2xf32> to vector<2x1xf32>
    %cst_36 = arith.constant 1.000000e-24 : f32
    %77 = vector.broadcast %cst_36 : f32 to vector<2x1xf32>
    %78 = arith.maximumf %76, %77 : vector<2x1xf32>
    %79 = math.rsqrt %78 : vector<2x1xf32>
    %80 = vector.broadcast %79 : vector<2x1xf32> to vector<2x32xf32>
    %81 = arith.mulf %71, %80 : vector<2x32xf32>
    %82 = arith.mulf %73, %73 : vector<2x32xf32>
    %cst_37 = arith.constant dense<0.000000e+00> : vector<2xf32>
    %83 = vector.multi_reduction <add>, %82, %cst_37 [1] : vector<2x32xf32> to vector<2xf32>
    %84 = vector.shape_cast %83 : vector<2xf32> to vector<2x1xf32>
    %cst_38 = arith.constant 1.000000e-24 : f32
    %85 = vector.broadcast %cst_38 : f32 to vector<2x1xf32>
    %86 = arith.maximumf %84, %85 : vector<2x1xf32>
    %87 = math.rsqrt %86 : vector<2x1xf32>
    %88 = vector.broadcast %87 : vector<2x1xf32> to vector<2x32xf32>
    %89 = arith.mulf %73, %88 : vector<2x32xf32>
    %cst_39 = arith.constant dense<0.000000e+00> : vector<2x2xf32>
    %90 = tpu.matmul %81, %89, %cst_39 {dimension_numbers = #tpu.dot_dimension_numbers<[1], [1], [0], [0], [0, 0, 1, 0], [], []>} : vector<2x32xf32>, vector<2x32xf32>, vector<2x2xf32> -> vector<2x2xf32>
    %cst_40 = arith.constant 5.000000e-04 : f32
    %cst_41 = arith.constant 0.999499976 : f32
    %91 = vector.broadcast %cst_40 : f32 to vector<2x2xf32>
    %92 = arith.maximumf %91, %90 : vector<2x2xf32>
    %93 = vector.broadcast %cst_41 : f32 to vector<2x2xf32>
    %94 = arith.minimumf %93, %92 : vector<2x2xf32>
    %cst_42 = arith.constant 1.000000e+00 : f32
    %95 = vector.broadcast %cst_42 : f32 to vector<2x2xf32>
    %96 = arith.subf %95, %94 : vector<2x2xf32>
    %97 = math.log %96 : vector<2x2xf32>
    %cst_43 = arith.constant 0.000000e+00 : f32
    %98 = vector.broadcast %cst_43 : f32 to vector<2x2xf32>
    %99 = arith.subf %98, %97 : vector<2x2xf32>
    %100 = vector.shape_cast %99 : vector<2x2xf32> to vector<1x2x2xf32>
    %cst_44 = arith.constant dense<0.000000e+00> : vector<1xf32>
    %101 = vector.multi_reduction <add>, %100, %cst_44 [1, 2] : vector<1x2x2xf32> to vector<1xf32>
    %102 = vector.shape_cast %101 : vector<1xf32> to vector<1x1x1xf32>
    %103 = vector.extract %102[0, 0, 0] : f32 from vector<1x1x1xf32>
    %104 = arith.addf %69, %103 : f32
    %c0_45 = arith.constant 0 : index
    %c3 = arith.constant 3 : index
    %c0_46 = arith.constant 0 : index
    %105 = vector.load %arg2[%c0_45, %c3, %c0_46] : memref<2x4x32xf32, #tpu.memory_space<vmem>>, vector<2x1x32xf32>
    %106 = vector.shape_cast %105 : vector<2x1x32xf32> to vector<2x32xf32>
    %c0_47 = arith.constant 0 : index
    %c3_48 = arith.constant 3 : index
    %c0_49 = arith.constant 0 : index
    %107 = vector.load %arg3[%c0_47, %c3_48, %c0_49] : memref<2x4x32xf32, #tpu.memory_space<vmem>>, vector<2x1x32xf32>
    %108 = vector.shape_cast %107 : vector<2x1x32xf32> to vector<2x32xf32>
    %109 = arith.mulf %106, %106 : vector<2x32xf32>
    %cst_50 = arith.constant dense<0.000000e+00> : vector<2xf32>
    %110 = vector.multi_reduction <add>, %109, %cst_50 [1] : vector<2x32xf32> to vector<2xf32>
    %111 = vector.shape_cast %110 : vector<2xf32> to vector<2x1xf32>
    %cst_51 = arith.constant 1.000000e-24 : f32
    %112 = vector.broadcast %cst_51 : f32 to vector<2x1xf32>
    %113 = arith.maximumf %111, %112 : vector<2x1xf32>
    %114 = math.rsqrt %113 : vector<2x1xf32>
    %115 = vector.broadcast %114 : vector<2x1xf32> to vector<2x32xf32>
    %116 = arith.mulf %106, %115 : vector<2x32xf32>
    %117 = arith.mulf %108, %108 : vector<2x32xf32>
    %cst_52 = arith.constant dense<0.000000e+00> : vector<2xf32>
    %118 = vector.multi_reduction <add>, %117, %cst_52 [1] : vector<2x32xf32> to vector<2xf32>
    %119 = vector.shape_cast %118 : vector<2xf32> to vector<2x1xf32>
    %cst_53 = arith.constant 1.000000e-24 : f32
    %120 = vector.broadcast %cst_53 : f32 to vector<2x1xf32>
    %121 = arith.maximumf %119, %120 : vector<2x1xf32>
    %122 = math.rsqrt %121 : vector<2x1xf32>
    %123 = vector.broadcast %122 : vector<2x1xf32> to vector<2x32xf32>
    %124 = arith.mulf %108, %123 : vector<2x32xf32>
    %cst_54 = arith.constant dense<0.000000e+00> : vector<2x2xf32>
    %125 = tpu.matmul %116, %124, %cst_54 {dimension_numbers = #tpu.dot_dimension_numbers<[1], [1], [0], [0], [0, 0, 1, 0], [], []>} : vector<2x32xf32>, vector<2x32xf32>, vector<2x2xf32> -> vector<2x2xf32>
    %cst_55 = arith.constant 5.000000e-04 : f32
    %cst_56 = arith.constant 0.999499976 : f32
    %126 = vector.broadcast %cst_55 : f32 to vector<2x2xf32>
    %127 = arith.maximumf %126, %125 : vector<2x2xf32>
    %128 = vector.broadcast %cst_56 : f32 to vector<2x2xf32>
    %129 = arith.minimumf %128, %127 : vector<2x2xf32>
    %cst_57 = arith.constant 1.000000e+00 : f32
    %130 = vector.broadcast %cst_57 : f32 to vector<2x2xf32>
    %131 = arith.subf %130, %129 : vector<2x2xf32>
    %132 = math.log %131 : vector<2x2xf32>
    %cst_58 = arith.constant 0.000000e+00 : f32
    %133 = vector.broadcast %cst_58 : f32 to vector<2x2xf32>
    %134 = arith.subf %133, %132 : vector<2x2xf32>
    %135 = vector.shape_cast %134 : vector<2x2xf32> to vector<1x2x2xf32>
    %cst_59 = arith.constant dense<0.000000e+00> : vector<1xf32>
    %136 = vector.multi_reduction <add>, %135, %cst_59 [1, 2] : vector<1x2x2xf32> to vector<1xf32>
    %137 = vector.shape_cast %136 : vector<1xf32> to vector<1x1x1xf32>
    %138 = vector.extract %137[0, 0, 0] : f32 from vector<1x1x1xf32>
    %139 = arith.addf %104, %138 : f32
    %140 = vector.broadcast %139 : f32 to vector<1x1x8x128xf32>
    %c0_60 = arith.constant 0 : index
    %c0_61 = arith.constant 0 : index
    %c0_62 = arith.constant 0 : index
    %c0_63 = arith.constant 0 : index
    %141 = vector.load %arg4[%c0_60, %c0_61, %c0_62, %c0_63] : memref<1x1x8x128xf32, #tpu.memory_space<vmem>>, vector<1x1x8x128xf32>
    tpu.vector_store %arg4[%c0_60, %c0_61, %c0_62, %c0_63], %140 {strides = array<i32>} : memref<1x1x8x128xf32, #tpu.memory_space<vmem>>, vector<1x1x8x128xf32>,
    return
  }
  func.func @transform_0(%arg0: i32, %arg1: i32) -> (i32, i32, i32) {
    %c0_i32 = arith.constant 0 : i32
    %c0_i32_0 = arith.constant 0 : i32
    return %arg1, %arg0, %c0_i32 : i32, i32, i32
  }
  func.func @transform_1(%arg0: i32, %arg1: i32) -> (i32, i32, i32) {
    %c0_i32 = arith.constant 0 : i32
    %c0_i32_0 = arith.constant 0 : i32
    %c0_i32_1 = arith.constant 0 : i32
    return %c0_i32, %arg0, %c0_i32_0 : i32, i32, i32
  }
  func.func @transform_2(%arg0: i32, %arg1: i32) -> (i32, i32, i32, i32) {
    %c0_i32 = arith.constant 0 : i32
    %c0_i32_0 = arith.constant 0 : i32
    %c0_i32_1 = arith.constant 0 : i32
    return %arg0, %arg1, %c0_i32, %c0_i32_0 : i32, i32, i32, i32
  }
}

</mosaic_0001>

<llo_original>
// kernel: tpu_custom_call.1
$region0: #{tpu_custom_call.1}
  #allocation0 [shape = 'u32[]', space=smem, size = 0x4, offset = 0x4, fixed_abs, tag = 'smem constant byte address 0x4 - core index']
  #allocation1 [shape = 'u32[72,128]{1,0:T(1,128)}', space=vmem, size = 0x9000, scoped, tag = 'internal scratch']
  %s0 = inlined_call_operand.hbm [shape: f32[2,4,32], index: 0, kind: input, shape index: {}]
  %s1 = inlined_call_operand.hbm [shape: f32[2,4,32], index: 1, kind: input, shape index: {}]
  %s2 = inlined_call_operand.hbm [shape: f32[1,1,8,128], index: 2, kind: output, shape index: {}]
  %s3 = sld [smem:[#allocation0]]
  $region26: #{tpu_custom_call.1} parent=0
    _
  %s5 = ssub.s32 1, %s3
  %s6 = scalar_select 0, %s5, %s3
  $region1: #{tpu_custom_call.1} parent=0
    #allocation2 [shape = 'u8[4096]{0}', space=vmem, size = 0x1000, scoped, tag = 'input window, operand 0, single buffered']
    #allocation3 [shape = 's32[1]{0}', space=sflag, size = 0x4, scoped, tag = 'scoped memory for tpu_custom_call.1']
    #allocation4 [shape = 's32[1]{0}', space=sflag, size = 0x4, scoped, tag = 'scoped memory for tpu_custom_call.1']
    #allocation5 [shape = 'u8[4096]{0}', space=vmem, size = 0x1000, scoped, tag = 'input window, operand 1, single buffered']
    #allocation6 [shape = 's32[1]{0}', space=sflag, size = 0x4, scoped, tag = 'scoped memory for tpu_custom_call.1']
    #allocation7 [shape = 'u8[4096]{0}', space=vmem, size = 0x1000, scoped, tag = 'output window, operand 0, single buffered']
    %7 = vsyncpa [#allocation3], 0
    %8 = vsyncpa [#allocation6], 0
    %9 = vsyncpa [#allocation4], 0
    // Predicated region
    $region2: #{tpu_custom_call.1} parent=1 // pred_check
      _
    $region3: #{tpu_custom_call.1} parent=1 // pred_check_branch
      %11 = sbr.rel (0) target = $region5
    $region4: #{tpu_custom_call.1} parent=1 // pred_region
      %13 = vsyncadd [#allocation3], 0
      %s14 = sshll.u32 %s0, 4
      %s15 = int_to_ptr.hbm [resolvable:$true] %s14
      %s16 = sshll.u32 [#allocation2], 4
      %s17 = int_to_ptr.vmem [resolvable:$true] %s16
      %22 = dma.hbm_to_vmem [thread:$0]  %s15, 128, %s17, [#allocation3], 64, 64, 4
    $region5: #{tpu_custom_call.1} parent=1 // pred_fallthru
      _
    // Predicated region
    $region6: #{tpu_custom_call.1} parent=1 // pred_check
      _
    $region7: #{tpu_custom_call.1} parent=1 // pred_check_branch
      %24 = sbr.rel (0) target = $region9
    $region8: #{tpu_custom_call.1} parent=1 // pred_region
      %26 = vsyncadd [#allocation6], 0
      %s27 = sshll.u32 %s1, 4
      %s28 = int_to_ptr.hbm [resolvable:$true] %s27
      %s29 = sshll.u32 [#allocation5], 4
      %s30 = int_to_ptr.vmem [resolvable:$true] %s29
      %35 = dma.hbm_to_vmem [thread:$0]  %s28, 128, %s30, [#allocation6], 64, 64, 4
    $region9: #{tpu_custom_call.1} parent=1 // pred_fallthru
      _
    // Predicated region
    $region10: #{tpu_custom_call.1} parent=1 // pred_check
      _
    $region11: #{tpu_custom_call.1} parent=1 // pred_check_branch
      %37 = sbr.rel (0) target = $region13
    $region12: #{tpu_custom_call.1} parent=1 // pred_region
      %39 = dma.done [#allocation3], 128
    $region13: #{tpu_custom_call.1} parent=1 // pred_fallthru
      _
    // Predicated region
    $region14: #{tpu_custom_call.1} parent=1 // pred_check
      _
    $region15: #{tpu_custom_call.1} parent=1 // pred_check_branch
      %41 = sbr.rel (0) target = $region17
    $region16: #{tpu_custom_call.1} parent=1 // pred_region
      %43 = dma.done [#allocation6], 128
    $region17: #{tpu_custom_call.1} parent=1 // pred_fallthru
      _
    %v44 = vld [vmem:[#allocation2] sm:$0x1]
    %v45 = vld [vmem:[#allocation2 + $0x4] sm:$0x1]
    %v46 = vld [vmem:[#allocation5] sm:$0x1]
    %v47 = vld [vmem:[#allocation5 + $0x4] sm:$0x1]
    %v48 = vmul.f32 %v44, %v44
    %v49 = vmul.f32 %v45, %v45
    %v52 = vrot.slane %v49, 7
    %vm53 = vcmask 1041409
    %v54 = vsel %vm53, %v52, %v48
    %vm56 = vcmask 254976
    %v57 = vsel %vm56, %v54, 0.0
    %58 = vadd.xlane.f32.xlu0 %v57
    %v59 = vpop.xlane.xlu0 %58
    %v60 = vmax.f32 %v59, 1e-24
    %v61 = vrsqrt.pop %v60
    %v62 = vmul.f32 %v61, %v60
    %v63 = vmul.f32 %v62, %v61
    %v64 = vmul.f32 0.5, %v63
    %v65 = vsub.f32 1.5, %v64
    %v66 = vmul.f32 %v61, %v65
    %vm67 = vweird.f32 %v60
    %vm68 = vweird.f32 %v61
    %vm69 = vmor %vm67, %vm68
    %v70 = vsel %vm69, %v61, %v66
    %v72 = vrot.slane %v70, 1
    %v75 = vmul.f32 %v44, %v70
    %v76 = vmul.f32 %v45, %v72
    %v77 = vmul.f32 %v46, %v46
    %v78 = vmul.f32 %v47, %v47
    %v81 = vrot.slane %v78, 7
    %v82 = vsel %vm53, %v81, %v77
    %v84 = vsel %vm56, %v82, 0.0
    %85 = vadd.xlane.f32.xlu0 %v84
    %v86 = vpop.xlane.xlu0 %85
    %v87 = vmax.f32 %v86, 1e-24
    %v88 = vrsqrt.pop %v87
    %v89 = vmul.f32 %v88, %v87
    %v90 = vmul.f32 %v89, %v88
    %v91 = vmul.f32 0.5, %v90
    %v92 = vsub.f32 1.5, %v91
    %v93 = vmul.f32 %v88, %v92
    %vm94 = vweird.f32 %v87
    %vm95 = vweird.f32 %v88
    %vm96 = vmor %vm94, %vm95
    %v97 = vsel %vm96, %v88, %v93
    %v99 = vrot.slane %v97, 1
    %v102 = vmul.f32 %v46, %v97
    %v103 = vmul.f32 %v47, %v99
    %v106 = vrot.slane %v76, 7
    %v107 = vsel %vm53, %v106, %v75
    %v110 = vrot.slane %v103, 7
    %v111 = vsel %vm53, %v110, %v102
    %vm112 = vcmask 261120
    %v113 = vsel %vm112, %v107, 0
    %v115 = vsel %vm112, %v111, 0
    %117 = vmatpush.xpose.msra.mxu0 0.0
    %118 = vmatpush.xpose.msra.mxu0 0.0
    %119 = vmatpush.xpose.msra.mxu0 0.0
    %120 = vmatpush.xpose.msra.mxu0 0.0
    %121 = vmatpush.xpose.msra.mxu0 0.0
    %122 = vmatpush.xpose.msra.mxu0 0.0
    %123 = vmatpush.xpose.msra.mxu0 0.0
    %124 = vmatpush.xpose.msra.mxu0 0.0
    %125 = vmatpush.xpose.msra.mxu0 0.0
    %126 = vmatpush.xpose.msra.mxu0 0.0
    %127 = vmatpush.xpose.msra.mxu0 0.0
    %128 = vmatpush.xpose.msra.mxu0 0.0
    %129 = vmatpush.xpose.msra.mxu0 0.0
    %130 = vmatpush.xpose.msra.mxu0 0.0
    %131 = vmatpush.xpose.msra.mxu0 0.0
    %132 = vmatpush.xpose.msra.mxu0 %v115
    %133 = vmatmul.f32.gmra.mxu0 %v113
    %v134 = vpop.f32.mrf.mxu0
    %v135 = vadd.f32 0.0, %v134
    %136 = vdwg.mxu0
    %v137 = vmax.f32 %v135, 0.0005
    %v138 = vmin.f32 %v137, 0.9995
    %v139 = vsub.f32 1.0, %v138
    %v140 = vlog2.pop %v139
    %v141 = vmul.f32 %v140, 0.6931472
    %v142 = vsub.f32 0.0, %v141
    %vm143 = vcmask 9216
    %v144 = vsel %vm143, %v142, 0.0
    %145 = vadd.xlane.f32.xlu0 %v144
    %v146 = vpop.xlane.xlu0 %145
    %v147 = vrot.slane %v146, 4
    %v148 = vadd.f32 %v146, %v147
    %v149 = vrot.slane %v148, 2
    %v150 = vadd.f32 %v148, %v149
    %v151 = vrot.slane %v150, 1
    %v152 = vadd.f32 %v150, %v151
    %s153 = vtos %v152
    %s154 = sadd.f32 %s153, 0.0
    %v155 = vld [vmem:[#allocation2 + $0x1] sm:$0x1]
    %v156 = vld [vmem:[#allocation2 + $0x5] sm:$0x1]
    %v157 = vld [vmem:[#allocation5 + $0x1] sm:$0x1]
    %v158 = vld [vmem:[#allocation5 + $0x5] sm:$0x1]
    %v159 = vmul.f32 %v155, %v155
    %v160 = vmul.f32 %v156, %v156
    %v163 = vrot.slane %v160, 7
    %v164 = vsel %vm53, %v163, %v159
    %v166 = vsel %vm56, %v164, 0.0
    %167 = vadd.xlane.f32.xlu0 %v166
    %v168 = vpop.xlane.xlu0 %167
    %v169 = vmax.f32 %v168, 1e-24
    %v170 = vrsqrt.pop %v169
    %v171 = vmul.f32 %v170, %v169
    %v172 = vmul.f32 %v171, %v170
    %v173 = vmul.f32 0.5, %v172
    %v174 = vsub.f32 1.5, %v173
    %v175 = vmul.f32 %v170, %v174
    %vm176 = vweird.f32 %v169
    %vm177 = vweird.f32 %v170
    %vm178 = vmor %vm176, %vm177
    %v179 = vsel %vm178, %v170, %v175
    %v181 = vrot.slane %v179, 1
    %v184 = vmul.f32 %v155, %v179
    %v185 = vmul.f32 %v156, %v181
    %v186 = vmul.f32 %v157, %v157
    %v187 = vmul.f32 %v158, %v158
    %v190 = vrot.slane %v187, 7
    %v191 = vsel %vm53, %v190, %v186
    %v193 = vsel %vm56, %v191, 0.0
    %194 = vadd.xlane.f32.xlu0 %v193
    %v195 = vpop.xlane.xlu0 %194
    %v196 = vmax.f32 %v195, 1e-24
    %v197 = vrsqrt.pop %v196
    %v198 = vmul.f32 %v197, %v196
    %v199 = vmul.f32 %v198, %v197
    %v200 = vmul.f32 0.5, %v199
    %v201 = vsub.f32 1.5, %v200
    %v202 = vmul.f32 %v197, %v201
    %vm203 = vweird.f32 %v196
    %vm204 = vweird.f32 %v197
    %vm205 = vmor %vm203, %vm204
    %v206 = vsel %vm205, %v197, %v202
    %v208 = vrot.slane %v206, 1
    %v211 = vmul.f32 %v157, %v206
    %v212 = vmul.f32 %v158, %v208
    %v215 = vrot.slane %v185, 7
    %v216 = vsel %vm53, %v215, %v184
    %v219 = vrot.slane %v212, 7
    %v220 = vsel %vm53, %v219, %v211
    %v221 = vsel %vm112, %v216, 0
    %v223 = vsel %vm112, %v220, 0
    %225 = vmatpush.xpose.msra.mxu0 0.0
    %226 = vmatpush.xpose.msra.mxu0 0.0
    %227 = vmatpush.xpose.msra.mxu0 0.0
    %228 = vmatpush.xpose.msra.mxu0 0.0
    %229 = vmatpush.xpose.msra.mxu0 0.0
    %230 = vmatpush.xpose.msra.mxu0 0.0
    %231 = vmatpush.xpose.msra.mxu0 0.0
    %232 = vmatpush.xpose.msra.mxu0 0.0
    %233 = vmatpush.xpose.msra.mxu0 0.0
    %234 = vmatpush.xpose.msra.mxu0 0.0
    %235 = vmatpush.xpose.msra.mxu0 0.0
    %236 = vmatpush.xpose.msra.mxu0 0.0
    %237 = vmatpush.xpose.msra.mxu0 0.0
    %238 = vmatpush.xpose.msra.mxu0 0.0
    %239 = vmatpush.xpose.msra.mxu0 0.0
    %240 = vmatpush.xpose.msra.mxu0 %v223
    %241 = vmatmul.f32.gmra.mxu0 %v221
    %v242 = vpop.f32.mrf.mxu0
    %v243 = vadd.f32 0.0, %v242
    %244 = vdwg.mxu0
    %v245 = vmax.f32 %v243, 0.0005
    %v246 = vmin.f32 %v245, 0.9995
    %v247 = vsub.f32 1.0, %v246
    %v248 = vlog2.pop %v247
    %v249 = vmul.f32 %v248, 0.6931472
    %v250 = vsub.f32 0.0, %v249
    %v251 = vsel %vm143, %v250, 0.0
    %252 = vadd.xlane.f32.xlu0 %v251
    %v253 = vpop.xlane.xlu0 %252
    %v254 = vrot.slane %v253, 4
    %v255 = vadd.f32 %v253, %v254
    %v256 = vrot.slane %v255, 2
    %v257 = vadd.f32 %v255, %v256
    %v258 = vrot.slane %v257, 1
    %v259 = vadd.f32 %v257, %v258
    %s260 = vtos %v259
    %s261 = sadd.f32 %s154, %s260
    %v262 = vld [vmem:[#allocation2 + $0x2] sm:$0x1]
    %v263 = vld [vmem:[#allocation2 + $0x6] sm:$0x1]
    %v264 = vld [vmem:[#allocation5 + $0x2] sm:$0x1]
    %v265 = vld [vmem:[#allocation5 + $0x6] sm:$0x1]
    %v266 = vmul.f32 %v262, %v262
    %v267 = vmul.f32 %v263, %v263
    %v270 = vrot.slane %v267, 7
    %v271 = vsel %vm53, %v270, %v266
    %v273 = vsel %vm56, %v271, 0.0
    %274 = vadd.xlane.f32.xlu0 %v273
    %v275 = vpop.xlane.xlu0 %274
    %v276 = vmax.f32 %v275, 1e-24
    %v277 = vrsqrt.pop %v276
    %v278 = vmul.f32 %v277, %v276
    %v279 = vmul.f32 %v278, %v277
    %v280 = vmul.f32 0.5, %v279
    %v281 = vsub.f32 1.5, %v280
    %v282 = vmul.f32 %v277, %v281
    %vm283 = vweird.f32 %v276
    %vm284 = vweird.f32 %v277
    %vm285 = vmor %vm283, %vm284
    %v286 = vsel %vm285, %v277, %v282
    %v288 = vrot.slane %v286, 1
    %v291 = vmul.f32 %v262, %v286
    %v292 = vmul.f32 %v263, %v288
    %v293 = vmul.f32 %v264, %v264
    %v294 = vmul.f32 %v265, %v265
    %v297 = vrot.slane %v294, 7
    %v298 = vsel %vm53, %v297, %v293
    %v300 = vsel %vm56, %v298, 0.0
    %301 = vadd.xlane.f32.xlu0 %v300
    %v302 = vpop.xlane.xlu0 %301
    %v303 = vmax.f32 %v302, 1e-24
    %v304 = vrsqrt.pop %v303
    %v305 = vmul.f32 %v304, %v303
    %v306 = vmul.f32 %v305, %v304
    %v307 = vmul.f32 0.5, %v306
    %v308 = vsub.f32 1.5, %v307
    %v309 = vmul.f32 %v304, %v308
    %vm310 = vweird.f32 %v303
    %vm311 = vweird.f32 %v304
    %vm312 = vmor %vm310, %vm311
    %v313 = vsel %vm312, %v304, %v309
    %v315 = vrot.slane %v313, 1
    %v318 = vmul.f32 %v264, %v313
    %v319 = vmul.f32 %v265, %v315
    %v322 = vrot.slane %v292, 7
    %v323 = vsel %vm53, %v322, %v291
    %v326 = vrot.slane %v319, 7
    %v327 = vsel %vm53, %v326, %v318
    %v328 = vsel %vm112, %v323, 0
    %v330 = vsel %vm112, %v327, 0
    %332 = vmatpush.xpose.msra.mxu0 0.0
    %333 = vmatpush.xpose.msra.mxu0 0.0
    %334 = vmatpush.xpose.msra.mxu0 0.0
    %335 = vmatpush.xpose.msra.mxu0 0.0
    %336 = vmatpush.xpose.msra.mxu0 0.0
    %337 = vmatpush.xpose.msra.mxu0 0.0
    %338 = vmatpush.xpose.msra.mxu0 0.0
    %339 = vmatpush.xpose.msra.mxu0 0.0
    %340 = vmatpush.xpose.msra.mxu0 0.0
    %341 = vmatpush.xpose.msra.mxu0 0.0
    %342 = vmatpush.xpose.msra.mxu0 0.0
    %343 = vmatpush.xpose.msra.mxu0 0.0
    %344 = vmatpush.xpose.msra.mxu0 0.0
    %345 = vmatpush.xpose.msra.mxu0 0.0
    %346 = vmatpush.xpose.msra.mxu0 0.0
    %347 = vmatpush.xpose.msra.mxu0 %v330
    %348 = vmatmul.f32.gmra.mxu0 %v328
    %v349 = vpop.f32.mrf.mxu0
    %v350 = vadd.f32 0.0, %v349
    %351 = vdwg.mxu0
    %v352 = vmax.f32 %v350, 0.0005
    %v353 = vmin.f32 %v352, 0.9995
    %v354 = vsub.f32 1.0, %v353
    %v355 = vlog2.pop %v354
    %v356 = vmul.f32 %v355, 0.6931472
    %v357 = vsub.f32 0.0, %v356
    %v358 = vsel %vm143, %v357, 0.0
    %359 = vadd.xlane.f32.xlu0 %v358
    %v360 = vpop.xlane.xlu0 %359
    %v361 = vrot.slane %v360, 4
    %v362 = vadd.f32 %v360, %v361
    %v363 = vrot.slane %v362, 2
    %v364 = vadd.f32 %v362, %v363
    %v365 = vrot.slane %v364, 1
    %v366 = vadd.f32 %v364, %v365
    %s367 = vtos %v366
    %s368 = sadd.f32 %s261, %s367
    %v369 = vld [vmem:[#allocation2 + $0x3] sm:$0x1]
    %v370 = vld [vmem:[#allocation2 + $0x7] sm:$0x1]
    %v371 = vld [vmem:[#allocation5 + $0x3] sm:$0x1]
    %v372 = vld [vmem:[#allocation5 + $0x7] sm:$0x1]
    %v373 = vmul.f32 %v369, %v369
    %v374 = vmul.f32 %v370, %v370
    %v377 = vrot.slane %v374, 7
    %v378 = vsel %vm53, %v377, %v373
    %v380 = vsel %vm56, %v378, 0.0
    %381 = vadd.xlane.f32.xlu0 %v380
    %v382 = vpop.xlane.xlu0 %381
    %v383 = vmax.f32 %v382, 1e-24
    %v384 = vrsqrt.pop %v383
    %v385 = vmul.f32 %v384, %v383
    %v386 = vmul.f32 %v385, %v384
    %v387 = vmul.f32 0.5, %v386
    %v388 = vsub.f32 1.5, %v387
    %v389 = vmul.f32 %v384, %v388
    %vm390 = vweird.f32 %v383
    %vm391 = vweird.f32 %v384
    %vm392 = vmor %vm390, %vm391
    %v393 = vsel %vm392, %v384, %v389
    %v395 = vrot.slane %v393, 1
    %v398 = vmul.f32 %v369, %v393
    %v399 = vmul.f32 %v370, %v395
    %v400 = vmul.f32 %v371, %v371
    %v401 = vmul.f32 %v372, %v372
    %v404 = vrot.slane %v401, 7
    %v405 = vsel %vm53, %v404, %v400
    %v407 = vsel %vm56, %v405, 0.0
    %408 = vadd.xlane.f32.xlu0 %v407
    %v409 = vpop.xlane.xlu0 %408
    %v410 = vmax.f32 %v409, 1e-24
    %v411 = vrsqrt.pop %v410
    %v412 = vmul.f32 %v411, %v410
    %v413 = vmul.f32 %v412, %v411
    %v414 = vmul.f32 0.5, %v413
    %v415 = vsub.f32 1.5, %v414
    %v416 = vmul.f32 %v411, %v415
    %vm417 = vweird.f32 %v410
    %vm418 = vweird.f32 %v411
    %vm419 = vmor %vm417, %vm418
    %v420 = vsel %vm419, %v411, %v416
    %v422 = vrot.slane %v420, 1
    %v425 = vmul.f32 %v371, %v420
    %v426 = vmul.f32 %v372, %v422
    %v429 = vrot.slane %v399, 7
    %v430 = vsel %vm53, %v429, %v398
    %v433 = vrot.slane %v426, 7
    %v434 = vsel %vm53, %v433, %v425
    %v435 = vsel %vm112, %v430, 0
    %v437 = vsel %vm112, %v434, 0
    %439 = vmatpush.xpose.msra.mxu0 0.0
    %440 = vmatpush.xpose.msra.mxu0 0.0
    %441 = vmatpush.xpose.msra.mxu0 0.0
    %442 = vmatpush.xpose.msra.mxu0 0.0
    %443 = vmatpush.xpose.msra.mxu0 0.0
    %444 = vmatpush.xpose.msra.mxu0 0.0
    %445 = vmatpush.xpose.msra.mxu0 0.0
    %446 = vmatpush.xpose.msra.mxu0 0.0
    %447 = vmatpush.xpose.msra.mxu0 0.0
    %448 = vmatpush.xpose.msra.mxu0 0.0
    %449 = vmatpush.xpose.msra.mxu0 0.0
    %450 = vmatpush.xpose.msra.mxu0 0.0
    %451 = vmatpush.xpose.msra.mxu0 0.0
    %452 = vmatpush.xpose.msra.mxu0 0.0
    %453 = vmatpush.xpose.msra.mxu0 0.0
    %454 = vmatpush.xpose.msra.mxu0 %v437
    %455 = vmatmul.f32.gmra.mxu0 %v435
    %v456 = vpop.f32.mrf.mxu0
    %v457 = vadd.f32 0.0, %v456
    %458 = vdwg.mxu0
    %v459 = vmax.f32 %v457, 0.0005
    %v460 = vmin.f32 %v459, 0.9995
    %v461 = vsub.f32 1.0, %v460
    %v462 = vlog2.pop %v461
    %v463 = vmul.f32 %v462, 0.6931472
    %v464 = vsub.f32 0.0, %v463
    %v465 = vsel %vm143, %v464, 0.0
    %466 = vadd.xlane.f32.xlu0 %v465
    %v467 = vpop.xlane.xlu0 %466
    %v468 = vrot.slane %v467, 4
    %v469 = vadd.f32 %v467, %v468
    %v470 = vrot.slane %v469, 2
    %v471 = vadd.f32 %v469, %v470
    %v472 = vrot.slane %v471, 1
    %v473 = vadd.f32 %v471, %v472
    %s474 = vtos %v473
    %s475 = sadd.f32 %s368, %s474
    %v476 = vstv %s475
    %477 = vst [vmem:[#allocation7] sm:$0xff] %v476
    // Predicated region
    $region18: #{tpu_custom_call.1} parent=1 // pred_check
      _
    $region19: #{tpu_custom_call.1} parent=1 // pred_check_branch
      %479 = sbr.rel (0) target = $region21
    $region20: #{tpu_custom_call.1} parent=1 // pred_region
      %481 = vsyncadd [#allocation4], 0
      %s483 = sshll.u32 [#allocation7], 4
      %s484 = int_to_ptr.vmem [resolvable:$true] %s483
      %s485 = sshll.u32 %s2, 4
      %s486 = int_to_ptr.hbm [resolvable:$true] %s485
      %488 = dma.vmem_to_hbm [thread:$0]  %s484, 128, %s486, [#allocation4]
    $region21: #{tpu_custom_call.1} parent=1 // pred_fallthru
      _
    // Predicated region
    $region22: #{tpu_custom_call.1} parent=1 // pred_check
      _
    $region23: #{tpu_custom_call.1} parent=1 // pred_check_branch
      %490 = sbr.rel (0) target = $region25
    $region24: #{tpu_custom_call.1} parent=1 // pred_region
      %492 = dma.done [#allocation4], 128
    $region25: #{tpu_custom_call.1} parent=1 // pred_fallthru
      _
    %493 = vsyncpa [#allocation3], 1
    %494 = vsyncpa [#allocation6], 1
    %495 = vsyncpa [#allocation4], 1

</llo_original>
